<compile_context>
chip_gen: v5e
topology: v5e:2x2
jax: 0.10.0
libtpu: 0.0.40
codegen_flags: <defaults>
</compile_context>

<pallas_src>
from functools import partial

import jax
import jax.numpy as jnp
from jax.experimental import pallas as pl
from jax.experimental.pallas import tpu as pltpu

LANE = 512          # lane-dense width (multiple of 128 -> unmasked vst)
TR_MAX = 512        # rows per tile -> (512, 512) f32 = 1 MiB per tile


def _if3_kernel(vth_ref, x_ref, mem_ref, spike_ref, newmem_ref):
    # vth_ref lives in SMEM (scalar parameter); tensors are VMEM tiles.
    vth = vth_ref[0]
    m = mem_ref[...] + x_ref[...]            # membrane += x
    s = (m >= vth).astype(jnp.float32)       # spike = (membrane >= V_th).float()
    spike_ref[...] = s
    newmem_ref[...] = m - s * vth            # membrane[spike] -= V_th


def _padded_rows(n, lane=LANE):
    """Rows of a lane-dense slab holding n elements, rounded up to sublane (8)."""
    rows = pl.cdiv(n, lane)
    return pl.cdiv(rows, 8) * 8


@partial(jax.jit, donate_argnums=(1,))
def _if3_step(x, membrane_padded, v_th):
    """One If3 step. x: any shape; membrane_padded: (rows_pad, LANE) f32 state."""
    orig_shape = x.shape
    n = x.size
    rows_pad, lane = membrane_padded.shape
    total = rows_pad * lane

    xf = x.reshape(-1).astype(jnp.float32)
    if total != n:
        xf = jnp.pad(xf, (0, total - n))
    xf = xf.reshape(rows_pad, lane)

    tr = min(TR_MAX, rows_pad)               # multiple of 8 by construction
    grid = (pl.cdiv(rows_pad, tr),)

    spike_f, newmem = pl.pallas_call(
        _if3_kernel,
        out_shape=(
            jax.ShapeDtypeStruct((rows_pad, lane), jnp.float32),   # spike
            jax.ShapeDtypeStruct((rows_pad, lane), jnp.float32),   # new membrane
        ),
        grid=grid,
        in_specs=[
            pl.BlockSpec(memory_space=pltpu.SMEM),            # V_th scalar
            pl.BlockSpec((tr, lane), lambda i: (i, 0)),       # x
            pl.BlockSpec((tr, lane), lambda i: (i, 0)),       # membrane
        ],
        out_specs=(
            pl.BlockSpec((tr, lane), lambda i: (i, 0)),       # spike
            pl.BlockSpec((tr, lane), lambda i: (i, 0)),       # new membrane
        ),
        input_output_aliases={2: 1},                          # membrane -> newmem
        compiler_params=pltpu.CompilerParams(
            dimension_semantics=("parallel",),
            vmem_limit_bytes=32 * 1024 * 1024,
        ),
    )(v_th.astype(jnp.float32), xf, membrane_padded)

    if total != n:
        spike = spike_f.reshape(-1)[:n].reshape(orig_shape)
    else:
        spike = spike_f.reshape(orig_shape)
    return spike, newmem


class If3Pallas:
    """Stateful wrapper mirroring torch If3 (lazy membrane creation + reset).

    The membrane state is stored in the padded (rows_pad, LANE) kernel layout
    across calls; the logical (NCHW) shape is tracked separately.
    """

    def __init__(self, V_th=1.0, V_reset=0):
        self.v_th = jnp.array([V_th], dtype=jnp.float32)  # nn.Parameter([V_th])
        self.V_reset = V_reset  # accepted but unused, matching torch If3
        self.membrane = None                 # padded kernel-layout state
        self._logical_shape = None
        self.init = True

    def __call__(self, x):
        if self.init or self._logical_shape != tuple(x.shape):
            rows_pad = _padded_rows(x.size)
            self.membrane = jnp.zeros((rows_pad, LANE), dtype=jnp.float32)
            self._logical_shape = tuple(x.shape)
            self.init = False
        spike, self.membrane = _if3_step(x, self.membrane, self.v_th)
        return spike

    def membrane_logical(self):
        """Membrane reshaped back to the logical input shape (for inspection)."""
        n = 1
        for d in self._logical_shape:
            n *= d
        return self.membrane.reshape(-1)[:n].reshape(self._logical_shape)

    def reset(self):
        if not self.init:
            self.membrane = self.membrane * 0.0


if __name__ == "__main__":
    key = jax.random.PRNGKey(0)
    # NCHW input, small shapes: batch=2, channels=4, spatial=16x16
    x1 = jax.random.normal(key, (2, 4, 16, 16), dtype=jnp.float32) * 1.5
    x2 = jax.random.normal(jax.random.fold_in(key, 1), (2, 4, 16, 16),
                           dtype=jnp.float32) * 1.5

    neuron = If3Pallas(V_th=1.0)

    # Step 1 (membrane starts at zero, created lazily like the torch module)
    s1 = neuron(x1)
    # Step 2 (membrane carries over -- stateful integrate-and-fire)
    s2 = neuron(x2)
    jax.block_until_ready((s1, s2, neuron.membrane))

    # Reference check in plain JAX (same semantics as torch If3.forward)
    vth = 1.0
    mem = jnp.zeros_like(x1)
    mem = mem + x1
    r1 = (mem >= vth).astype(jnp.float32)
    mem = jnp.where(mem >= vth, mem - vth, mem)
    mem = mem + x2
    r2 = (mem >= vth).astype(jnp.float32)
    mem = jnp.where(mem >= vth, mem - vth, mem)

    assert jnp.array_equal(s1, r1)
    assert jnp.array_equal(s2, r2)
    assert jnp.allclose(neuron.membrane_logical(), mem, atol=1e-6)

    print("KERNEL_OK")
</pallas_src>

<mosaic_0001>
module attributes {stable_mosaic.version = 11 : i64} {
  func.func @_if3_kernel(%arg0: i32, %arg1: memref<1xf32, #tpu.memory_space<smem>>, %arg2: memref<8x512xf32, #tpu.memory_space<vmem>>, %arg3: memref<8x512xf32, #tpu.memory_space<vmem>>, %arg4: memref<8x512xf32, #tpu.memory_space<vmem>>, %arg5: memref<8x512xf32, #tpu.memory_space<vmem>>) attributes {dimension_semantics = [#tpu.dimension_semantics<parallel>], iteration_bounds = array<i64: 1>, scalar_prefetch = 0 : i64, scratch_operands = 0 : i64, tpu.core_type = #tpu.core_type<tc>, window_params = [{transform_indices = @transform_0, window_bounds = array<i64: 1>}, {transform_indices = @transform_1, window_bounds = array<i64: 8, 512>}, {transform_indices = @transform_2, window_bounds = array<i64: 8, 512>}, {transform_indices = @transform_3, window_bounds = array<i64: 8, 512>}, {transform_indices = @transform_4, window_bounds = array<i64: 8, 512>}]} {
    %c0 = arith.constant 0 : index
    %0 = memref.load %arg1[%c0] : memref<1xf32, #tpu.memory_space<smem>>
    %c0_0 = arith.constant 0 : index
    %c0_1 = arith.constant 0 : index
    %1 = vector.load %arg3[%c0_0, %c0_1] : memref<8x512xf32, #tpu.memory_space<vmem>>, vector<8x512xf32>
    %c0_2 = arith.constant 0 : index
    %c0_3 = arith.constant 0 : index
    %2 = vector.load %arg2[%c0_2, %c0_3] : memref<8x512xf32, #tpu.memory_space<vmem>>, vector<8x512xf32>
    %3 = arith.addf %1, %2 : vector<8x512xf32>
    %4 = vector.broadcast %0 : f32 to vector<8x512xf32>
    %5 = arith.cmpf oge, %3, %4 : vector<8x512xf32>
    %6 = arith.extui %5 : vector<8x512xi1> to vector<8x512xi32>
    %7 = arith.sitofp %6 : vector<8x512xi32> to vector<8x512xf32>
    %c0_4 = arith.constant 0 : index
    %c0_5 = arith.constant 0 : index
    %8 = vector.load %arg4[%c0_4, %c0_5] : memref<8x512xf32, #tpu.memory_space<vmem>>, vector<8x512xf32>
    tpu.vector_store %arg4[%c0_4, %c0_5], %7 {strides = array<i32>} : memref<8x512xf32, #tpu.memory_space<vmem>>, vector<8x512xf32>,
    %9 = vector.broadcast %0 : f32 to vector<8x512xf32>
    %10 = arith.mulf %7, %9 : vector<8x512xf32>
    %11 = arith.subf %3, %10 : vector<8x512xf32>
    %c0_6 = arith.constant 0 : index
    %c0_7 = arith.constant 0 : index
    %12 = vector.load %arg5[%c0_6, %c0_7] : memref<8x512xf32, #tpu.memory_space<vmem>>, vector<8x512xf32>
    tpu.vector_store %arg5[%c0_6, %c0_7], %11 {strides = array<i32>} : memref<8x512xf32, #tpu.memory_space<vmem>>, vector<8x512xf32>,
    return
  }
  func.func @transform_0(%arg0: i32) -> i32 {
    %c0_i32 = arith.constant 0 : i32
    %c0_i32_0 = arith.constant 0 : i32
    return %c0_i32 : i32
  }
  func.func @transform_1(%arg0: i32) -> (i32, i32) {
    %c0_i32 = arith.constant 0 : i32
    %c0_i32_0 = arith.constant 0 : i32
    return %arg0, %c0_i32 : i32, i32
  }
  func.func @transform_2(%arg0: i32) -> (i32, i32) {
    %c0_i32 = arith.constant 0 : i32
    %c0_i32_0 = arith.constant 0 : i32
    return %arg0, %c0_i32 : i32, i32
  }
  func.func @transform_3(%arg0: i32) -> (i32, i32) {
    %c0_i32 = arith.constant 0 : i32
    %c0_i32_0 = arith.constant 0 : i32
    return %arg0, %c0_i32 : i32, i32
  }
  func.func @transform_4(%arg0: i32) -> (i32, i32) {
    %c0_i32 = arith.constant 0 : i32
    %c0_i32_0 = arith.constant 0 : i32
    return %arg0, %c0_i32 : i32, i32
  }
}

</mosaic_0001>

<llo_original>
// kernel: _if3_step.1
$region0: #{_if3_step.1}
  #allocation0 [shape = 'u32[]', space=smem, size = 0x4, offset = 0x4, fixed_abs, tag = 'smem constant byte address 0x4 - core index']
  #allocation1 [shape = 'u32[72,128]{1,0:T(1,128)}', space=vmem, size = 0x9000, scoped, tag = 'internal scratch']
  #allocation2 [shape = 'f32[1]{0:T(128)S(6)}', space=smem, size = 0x200, scoped, tag = 'scoped memory for _if3_step.1']
  %s0 = inlined_call_operand.<no memory space> [shape: f32[1], index: 0, kind: input, shape index: {}]
  %s1 = inlined_call_operand.vmem [shape: f32[8,512], index: 1, kind: input, shape index: {}]
  %s2 = inlined_call_operand.vmem [shape: f32[8,512], index: 2, kind: input, shape index: {}, may-alias: {2,4}]
  %s3 = inlined_call_operand.vmem [shape: f32[8,512], index: 3, kind: output, shape index: {0}]
  %s4 = inlined_call_operand.vmem [shape: f32[8,512], index: 4, kind: output, shape index: {1}, may-alias: {2,4}]
  %5 = xla_tuple %s3, %s4
  %s6 = sld [smem:[#allocation0]]
  $region30: #{_if3_step.1} parent=0
    _
  %s8 = ssub.s32 1, %s6
  %s9 = scalar_select 0, %s8, %s6
  %10 = sst [smem:[#allocation2]] %s0
  // Predicated region
  $region2: #{_if3_step.1} parent=0 // pred_check
    _
  $region3: #{_if3_step.1} parent=0 // pred_check_branch
    %12 = sbr.rel (0) target = $region5
  $region4: #{_if3_step.1} parent=0 // pred_region
    _
  $region5: #{_if3_step.1} parent=0 // pred_fallthru
    _
  // Predicated region
  $region6: #{_if3_step.1} parent=0 // pred_check
    _
  $region7: #{_if3_step.1} parent=0 // pred_check_branch
    %14 = sbr.rel (0) target = $region9
  $region8: #{_if3_step.1} parent=0 // pred_region
    _
  $region9: #{_if3_step.1} parent=0 // pred_fallthru
    _
  // Predicated region
  $region10: #{_if3_step.1} parent=0 // pred_check
    _
  $region11: #{_if3_step.1} parent=0 // pred_check_branch
    %16 = sbr.rel (0) target = $region13
  $region12: #{_if3_step.1} parent=0 // pred_region
    _
  $region13: #{_if3_step.1} parent=0 // pred_fallthru
    _
  %s17 = sld [smem:[#allocation2]]
  %v18 = vld [vmem:[%s2] sm:$0xff]
  %v19 = vld [vmem:[%s2 + $0x8] sm:$0xff]
  %v20 = vld [vmem:[%s2 + $0x10] sm:$0xff]
  %v21 = vld [vmem:[%s2 + $0x18] sm:$0xff]
  %v22 = vld [vmem:[%s1] sm:$0xff]
  %v23 = vld [vmem:[%s1 + $0x8] sm:$0xff]
  %v24 = vld [vmem:[%s1 + $0x10] sm:$0xff]
  %v25 = vld [vmem:[%s1 + $0x18] sm:$0xff]
  %v26 = vadd.f32 %v18, %v22
  %v27 = vadd.f32 %v19, %v23
  %v28 = vadd.f32 %v20, %v24
  %v29 = vadd.f32 %v21, %v25
  %v30 = vstv %s17
  %vm31 = vcmp.ge.f32.partialorder %v26, %v30
  %vm32 = vcmp.ge.f32.partialorder %v27, %v30
  %vm33 = vcmp.ge.f32.partialorder %v28, %v30
  %vm34 = vcmp.ge.f32.partialorder %v29, %v30
  %v35 = vsel %vm31, 1, 0
  %v36 = vsel %vm32, 1, 0
  %v37 = vsel %vm33, 1, 0
  %v38 = vsel %vm34, 1, 0
  %v39 = vcvt.s32.f32 %v35
  %v40 = vcvt.s32.f32 %v36
  %v41 = vcvt.s32.f32 %v37
  %v42 = vcvt.s32.f32 %v38
  %43 = vst [vmem:[%s3] sm:$0xff] %v39
  %44 = vst [vmem:[%s3 + $0x8] sm:$0xff] %v40
  %45 = vst [vmem:[%s3 + $0x10] sm:$0xff] %v41
  %46 = vst [vmem:[%s3 + $0x18] sm:$0xff] %v42
  %v47 = vmul.f32 %v39, %v30
  %v48 = vmul.f32 %v40, %v30
  %v49 = vmul.f32 %v41, %v30
  %v50 = vmul.f32 %v42, %v30
  %v51 = vsub.f32 %v26, %v47
  %v52 = vsub.f32 %v27, %v48
  %v53 = vsub.f32 %v28, %v49
  %v54 = vsub.f32 %v29, %v50
  %55 = vst [vmem:[%s4] sm:$0xff] %v51
  %56 = vst [vmem:[%s4 + $0x8] sm:$0xff] %v52
  %57 = vst [vmem:[%s4 + $0x10] sm:$0xff] %v53
  %58 = vst [vmem:[%s4 + $0x18] sm:$0xff] %v54
  // Predicated region
  $region14: #{_if3_step.1} parent=0 // pred_check
    _
  $region15: #{_if3_step.1} parent=0 // pred_check_branch
    %60 = sbr.rel (0) target = $region17
  $region16: #{_if3_step.1} parent=0 // pred_region
    _
  $region17: #{_if3_step.1} parent=0 // pred_fallthru
    _
  // Predicated region
  $region18: #{_if3_step.1} parent=0 // pred_check
    _
  $region19: #{_if3_step.1} parent=0 // pred_check_branch
    %62 = sbr.rel (0) target = $region21
  $region20: #{_if3_step.1} parent=0 // pred_region
    _
  $region21: #{_if3_step.1} parent=0 // pred_fallthru
    _
  // Predicated region
  $region22: #{_if3_step.1} parent=0 // pred_check
    _
  $region23: #{_if3_step.1} parent=0 // pred_check_branch
    %64 = sbr.rel (0) target = $region25
  $region24: #{_if3_step.1} parent=0 // pred_region
    _
  $region25: #{_if3_step.1} parent=0 // pred_fallthru
    _
  // Predicated region
  $region26: #{_if3_step.1} parent=0 // pred_check
    _
  $region27: #{_if3_step.1} parent=0 // pred_check_branch
    %66 = sbr.rel (0) target = $region29
  $region28: #{_if3_step.1} parent=0 // pred_region
    _
  $region29: #{_if3_step.1} parent=0 // pred_fallthru
    _

</llo_original>
